<compile_context>
chip_gen: v7x
topology: tpu7x:2x2x1
jax: 0.10.0
libtpu: 0.0.40
codegen_flags: <defaults>
</compile_context>

<pallas_src>
import jax
import jax.numpy as jnp
from jax.experimental import pallas as pl
from jax.experimental.pallas import tpu as pltpu


def _sabn_kernel(x_ref, shift_ref, scale_ref, o_ref):
    # x_ref: (tr, tc) tile of the 2-D view of the input.
    # shift_ref/scale_ref: (tr, 1) or (1, tc) f32 blocks; broadcasting covers both.
    x = x_ref[...].astype(jnp.float32)
    o_ref[...] = ((x - shift_ref[...]) * scale_ref[...]).astype(o_ref.dtype)


def _round_up(v, m):
    return ((v + m - 1) // m) * m


def _sublane_align(dtype):
    itemsize = jnp.dtype(dtype).itemsize
    if itemsize >= 4:
        return 8
    if itemsize == 2:
        return 16
    return 32


def _choose_tiles(R, L, itemsize, salign, tile_bytes, min_steps, split_threshold_bytes):
    """Byte-budget tile sizing + minimum-grid-step guarantee.

    Blocks never exceed the array dims (trailing partial blocks are handled by
    Pallas masking); dims smaller than the alignment unit use the full-dim
    exemption of the (8,128) rule.
    """
    if R >= salign:
        tr_max, r_unit = (R // salign) * salign, salign
    else:
        tr_max, r_unit = R, R          # full-dim block
    if L >= 128:
        tc_max, c_unit = (L // 128) * 128, 128
    else:
        tc_max, c_unit = L, L          # full-dim block

    # ---- ~tile_bytes per buffer ----
    tc = min(tc_max, 2048) if c_unit == 128 else tc_max
    tr = (tile_bytes // (tc * itemsize)) // r_unit * r_unit
    tr = int(min(max(tr, r_unit), tr_max))
    if tr == tr_max and c_unit == 128:
        # Rows maxed out: spend the remaining byte budget on wider lane tiles.
        tc_b = (tile_bytes // (max(tr, 1) * itemsize)) // 128 * 128
        tc = int(min(tc_max, max(tc, max(128, tc_b))))

    # ---- guarantee >= min_steps grid steps for pipelining / 2-TC sharding ----
    if R * L * itemsize >= split_threshold_bytes:
        if pl.cdiv(R, tr) * pl.cdiv(L, tc) < min_steps and r_unit == salign:
            want_rows = pl.cdiv(min_steps, pl.cdiv(L, tc))
            tr = int(min(max(salign, _round_up(pl.cdiv(R, want_rows), salign)), tr_max))
        if pl.cdiv(R, tr) * pl.cdiv(L, tc) < min_steps and c_unit == 128:
            want_cols = pl.cdiv(min_steps, pl.cdiv(R, tr))
            tc = int(min(max(128, _round_up(pl.cdiv(L, want_cols), 128)), tc_max))
    return tr, tc


def spatial_adaptive_batch_norm_2d(
    x,
    running_mean,
    running_var,
    *,
    eps=1e-5,
    tile_bytes=4 << 20,             # ~4 MiB per buffer (safe on v5e/v6e/v7x)
    min_steps=8,                    # >= 2 steps per TensorCore on v7x + pipelining
    split_threshold_bytes=2 << 20,  # only force extra steps on non-tiny tensors
    donate_input=False,
):
    """out = (x - running_mean) * rsqrt(running_var + eps) for NCHW x."""
    B, C, H, W = x.shape
    itemsize = jnp.dtype(x.dtype).itemsize
    salign = _sublane_align(x.dtype)

    # Tiny per-channel affine precompute (C f32 values; negligible HBM traffic).
    mean_c = running_mean.reshape(C).astype(jnp.float32)
    scale_c = jax.lax.rsqrt(running_var.reshape(C).astype(jnp.float32) + jnp.float32(eps))

    HW = H * W
    CHW = C * HW

    # Pick the lane-dense 2-D view.
    row_affine = (HW >= 128) or (CHW < 128)
    if row_affine:
        R, L = B * C, HW                         # one row per (b, c)
        shift = jnp.tile(mean_c, B).reshape(R, 1)
        scale = jnp.tile(scale_c, B).reshape(R, 1)
    else:
        R, L = B, CHW                            # one row per batch, lanes = (c,h,w)
        shift = jnp.repeat(mean_c, HW).reshape(1, L)
        scale = jnp.repeat(scale_c, HW).reshape(1, L)
    x2 = x.reshape(R, L)                         # contiguous, free view

    tr, tc = _choose_tiles(R, L, itemsize, salign, tile_bytes, min_steps,
                           split_threshold_bytes)
    grid = (pl.cdiv(R, tr), pl.cdiv(L, tc))      # rows outer, cols innermost

    if row_affine:
        # (i, 0) is constant across the inner column loop -> shift/scale are
        # DMA'd once per row block, not once per grid step.
        shift_spec = pl.BlockSpec((tr, 1), lambda i, j: (i, 0))
        scale_spec = pl.BlockSpec((tr, 1), lambda i, j: (i, 0))
    else:
        shift_spec = pl.BlockSpec((1, tc), lambda i, j: (0, j))
        scale_spec = pl.BlockSpec((1, tc), lambda i, j: (0, j))

    out2 = pl.pallas_call(
        _sabn_kernel,
        out_shape=jax.ShapeDtypeStruct((R, L), x.dtype),
        grid_spec=pltpu.PrefetchScalarGridSpec(
            num_scalar_prefetch=0,
            grid=grid,
            in_specs=[
                pl.BlockSpec((tr, tc), lambda i, j: (i, j)),   # x tile
                shift_spec,
                scale_spec,
            ],
            out_specs=pl.BlockSpec((tr, tc), lambda i, j: (i, j)),
        ),
        compiler_params=pltpu.CompilerParams(
            dimension_semantics=("parallel", "parallel"),
            # Load-bearing on v5e (16 MiB default scoped VMEM); safe on v7x (64 MiB).
            vmem_limit_bytes=48 * 1024 * 1024,
        ),
        input_output_aliases=({0: 0} if donate_input else {}),
    )(x2, shift, scale)

    return out2.reshape(B, C, H, W)


class SpatialAdaptiveBatchNorm2d:
    """JAX/Pallas port of the PyTorch module's forward pass."""

    def __init__(self, num_features, momentum=0.05, eps=1e-5):
        self.eps = eps
        self.momentum = momentum
        self.running_mean = jnp.zeros((1, num_features, 1, 1), jnp.float32)
        self.running_var = jnp.ones((1, num_features, 1, 1), jnp.float32)
        self.num_batches_tracked = jnp.array(0, dtype=jnp.int32)
        self.training = False

    def __call__(self, x):
        if self.training:
            B, C, H, W = x.shape
            n = B * H * W
            xf = x.astype(jnp.float32)
            # Single fused HBM pass: sum and sum-of-squares over the same f32
            # operand (XLA fuses the two reductions into one read of x).
            s1 = jnp.sum(xf, axis=(0, 2, 3), keepdims=True)
            s2 = jnp.sum(xf * xf, axis=(0, 2, 3), keepdims=True)
            mean = s1 / n
            # Unbiased variance; clamp tiny negatives from f32 cancellation.
            var = jnp.maximum((s2 - n * mean * mean) / (n - 1), 0.0)
            # TODO(synk): torch.distributed all_reduce of mean/var across devices;
            # single-device here => world_size == 1 and SUM + divide is a no-op.
            self.running_mean = self.running_mean + (mean - self.running_mean) * self.momentum
            self.running_var = self.running_var + (var - self.running_var) * self.momentum
            self.num_batches_tracked = self.num_batches_tracked + 1
        return spatial_adaptive_batch_norm_2d(
            x, self.running_mean, self.running_var, eps=self.eps
        )


if __name__ == "__main__":
    key = jax.random.PRNGKey(0)
    B, C, H, W = 2, 4, 16, 16
    k1, k2, k3, k4 = jax.random.split(key, 4)
    x = jax.random.normal(k1, (B, C, H, W), dtype=jnp.float32)

    bn = SpatialAdaptiveBatchNorm2d(C)
    # Non-trivial running stats so the kernel math is actually exercised.
    bn.running_mean = 0.5 * jax.random.normal(k2, (1, C, 1, 1), dtype=jnp.float32)
    bn.running_var = jax.random.uniform(k3, (1, C, 1, 1), dtype=jnp.float32) + 0.5

    # --- eval-mode forward (H*W >= 128 -> (B*C, H*W) lane-dense view) ---
    y = jax.block_until_ready(bn(x))
    y_ref = (x - bn.running_mean) * jax.lax.rsqrt(bn.running_var + bn.eps)
    assert y.shape == x.shape and y.dtype == x.dtype
    assert jnp.allclose(y, y_ref, atol=1e-5, rtol=1e-5)

    # --- small-spatial path (H*W < 128 -> (B, C*H*W) lane-dense view) ---
    x_small = jax.random.normal(k4, (B, C, 8, 8), dtype=jnp.float32)
    y_small = jax.block_until_ready(
        spatial_adaptive_batch_norm_2d(x_small, bn.running_mean, bn.running_var, eps=bn.eps)
    )
    y_small_ref = (x_small - bn.running_mean) * jax.lax.rsqrt(bn.running_var + bn.eps)
    assert jnp.allclose(y_small, y_small_ref, atol=1e-5, rtol=1e-5)

    # --- one training step (single device => all_reduce identity) ---
    prev_mean, prev_var = bn.running_mean, bn.running_var
    bn.training = True
    y_tr = jax.block_until_ready(bn(x))
    batch_mean = jnp.mean(x, axis=(0, 2, 3), keepdims=True)
    batch_var = jnp.var(x, axis=(0, 2, 3), keepdims=True, ddof=1)
    exp_mean = prev_mean + (batch_mean - prev_mean) * bn.momentum
    exp_var = prev_var + (batch_var - prev_var) * bn.momentum
    assert jnp.allclose(bn.running_mean, exp_mean, atol=1e-5, rtol=1e-5)
    assert jnp.allclose(bn.running_var, exp_var, atol=1e-4, rtol=1e-4)
    y_tr_ref = (x - bn.running_mean) * jax.lax.rsqrt(bn.running_var + bn.eps)
    assert jnp.allclose(y_tr, y_tr_ref, atol=1e-5, rtol=1e-5)
    assert int(bn.num_batches_tracked) == 1

    print("KERNEL_OK")
</pallas_src>

<mosaic_0001>
module attributes {stable_mosaic.version = 11 : i64} {
  func.func @_sabn_kernel(%arg0: i32, %arg1: i32, %arg2: memref<8x256xf32, #tpu.memory_space<vmem>>, %arg3: memref<8x1xf32, #tpu.memory_space<vmem>>, %arg4: memref<8x1xf32, #tpu.memory_space<vmem>>, %arg5: memref<8x256xf32, #tpu.memory_space<vmem>>) attributes {dimension_semantics = [#tpu.dimension_semantics<parallel>, #tpu.dimension_semantics<parallel>], iteration_bounds = array<i64: 1, 1>, scalar_prefetch = 0 : i64, scratch_operands = 0 : i64, tpu.core_type = #tpu.core_type<tc>, window_params = [{transform_indices = @transform_0, window_bounds = array<i64: 8, 256>}, {transform_indices = @transform_1, window_bounds = array<i64: 8, 1>}, {transform_indices = @transform_2, window_bounds = array<i64: 8, 1>}, {transform_indices = @transform_3, window_bounds = array<i64: 8, 256>}]} {
    %c0 = arith.constant 0 : index
    %c0_0 = arith.constant 0 : index
    %0 = vector.load %arg2[%c0, %c0_0] : memref<8x256xf32, #tpu.memory_space<vmem>>, vector<8x256xf32>
    %c0_1 = arith.constant 0 : index
    %c0_2 = arith.constant 0 : index
    %1 = vector.load %arg3[%c0_1, %c0_2] : memref<8x1xf32, #tpu.memory_space<vmem>>, vector<8x1xf32>
    %2 = vector.broadcast %1 : vector<8x1xf32> to vector<8x256xf32>
    %3 = arith.subf %0, %2 : vector<8x256xf32>
    %c0_3 = arith.constant 0 : index
    %c0_4 = arith.constant 0 : index
    %4 = vector.load %arg4[%c0_3, %c0_4] : memref<8x1xf32, #tpu.memory_space<vmem>>, vector<8x1xf32>
    %5 = vector.broadcast %4 : vector<8x1xf32> to vector<8x256xf32>
    %6 = arith.mulf %3, %5 : vector<8x256xf32>
    %c0_5 = arith.constant 0 : index
    %c0_6 = arith.constant 0 : index
    %7 = vector.load %arg5[%c0_5, %c0_6] : memref<8x256xf32, #tpu.memory_space<vmem>>, vector<8x256xf32>
    tpu.vector_store %arg5[%c0_5, %c0_6], %6 {strides = array<i32>} : memref<8x256xf32, #tpu.memory_space<vmem>>, vector<8x256xf32>,
    return
  }
  func.func @transform_0(%arg0: i32, %arg1: i32) -> (i32, i32) {
    %c0_i32 = arith.constant 0 : i32
    return %arg0, %arg1 : i32, i32
  }
  func.func @transform_1(%arg0: i32, %arg1: i32) -> (i32, i32) {
    %c0_i32 = arith.constant 0 : i32
    %c0_i32_0 = arith.constant 0 : i32
    return %arg0, %c0_i32 : i32, i32
  }
  func.func @transform_2(%arg0: i32, %arg1: i32) -> (i32, i32) {
    %c0_i32 = arith.constant 0 : i32
    %c0_i32_0 = arith.constant 0 : i32
    return %arg0, %c0_i32 : i32, i32
  }
  func.func @transform_3(%arg0: i32, %arg1: i32) -> (i32, i32) {
    %c0_i32 = arith.constant 0 : i32
    return %arg0, %arg1 : i32, i32
  }
}

</mosaic_0001>

<llo_original>
// kernel: tpu_custom_call.1
$region0: #{tpu_custom_call.1}
  #allocation0 [shape = 'u32[]', space=smem, size = 0x4, offset = 0x4, fixed_abs, tag = 'smem constant byte address 0x4 - core index']
  #allocation1 [shape = 'u32[144,128]{1,0:T(1,128)}', space=vmem, size = 0x12000, scoped, tag = 'internal scratch']
  %s0 = inlined_call_operand.vmem [shape: f32[8,256], index: 0, kind: input, shape index: {}]
  %s1 = inlined_call_operand.vmem [shape: f32[8,1], index: 1, kind: input, shape index: {}]
  %s2 = inlined_call_operand.vmem [shape: f32[8,1], index: 2, kind: input, shape index: {}]
  %s3 = inlined_call_operand.hbm [shape: f32[8,256], index: 3, kind: output, shape index: {}]
  %s4 = sld [smem:[#allocation0]]
  $region22: #{tpu_custom_call.1} parent=0
    _
  %s6 = ssub.s32 1, %s4
  %s7 = scalar_select 0, %s6, %s4
  $region1: #{tpu_custom_call.1} parent=0
    #allocation2 [shape = 'u8[8192]{0}', space=vmem, size = 0x2000, scoped, tag = 'output window, operand 0, single buffered']
    #allocation3 [shape = 's32[1]{0}', space=sflag, size = 0x4, scoped, tag = 'scoped memory for tpu_custom_call.1']
    %8 = vsyncpa [#allocation3], 0
    // Predicated region
    $region2: #{tpu_custom_call.1} parent=1 // pred_check
      _
    $region3: #{tpu_custom_call.1} parent=1 // pred_check_branch
      %10 = sbr.rel (0) target = $region5
    $region4: #{tpu_custom_call.1} parent=1 // pred_region
      _
    $region5: #{tpu_custom_call.1} parent=1 // pred_fallthru
      _
    // Predicated region
    $region6: #{tpu_custom_call.1} parent=1 // pred_check
      _
    $region7: #{tpu_custom_call.1} parent=1 // pred_check_branch
      %12 = sbr.rel (0) target = $region9
    $region8: #{tpu_custom_call.1} parent=1 // pred_region
      _
    $region9: #{tpu_custom_call.1} parent=1 // pred_fallthru
      _
    // Predicated region
    $region10: #{tpu_custom_call.1} parent=1 // pred_check
      _
    $region11: #{tpu_custom_call.1} parent=1 // pred_check_branch
      %14 = sbr.rel (0) target = $region13
    $region12: #{tpu_custom_call.1} parent=1 // pred_region
      _
    $region13: #{tpu_custom_call.1} parent=1 // pred_fallthru
      _
    %v15 = vld [vmem:[%s0] sm:$0xff]
    %v16 = vld [vmem:[%s0 + $0x8] sm:$0xff]
    %v17 = vld [vmem:[%s1] sm:$0xff]
    %19 = vset.pattern.permute.xlu0 0
    %20 = vperm.xlu0 %19, %v17
    %v21 = vpop.permute.xlu0 %20
    %v23 = vsub.f32 %v15, %v21
    %v24 = vsub.f32 %v16, %v21
    %v25 = vld [vmem:[%s2] sm:$0xff]
    %27 = vset.pattern.permute.xlu0 0
    %28 = vperm.xlu0 %27, %v25
    %v29 = vpop.permute.xlu0 %28
    %v31 = vmul.f32 %v23, %v29
    %v32 = vmul.f32 %v24, %v29
    %33 = vst [vmem:[#allocation2] sm:$0xff] %v31
    %34 = vst [vmem:[#allocation2 + $0x8] sm:$0xff] %v32
    // Predicated region
    $region14: #{tpu_custom_call.1} parent=1 // pred_check
      _
    $region15: #{tpu_custom_call.1} parent=1 // pred_check_branch
      %36 = sbr.rel (0) target = $region17
    $region16: #{tpu_custom_call.1} parent=1 // pred_region
      %s38 = ssub.s32 256, 256
      %39 = vsyncadd [#allocation3], %s38
      %s41 = sshll.u32 [#allocation2], 4
      %s42 = int_to_ptr.vmem [resolvable:$true] %s41
      %44 = dma.vmem_to_hbm [thread:$0]  %s42, 256, %s3, [#allocation3]
    $region17: #{tpu_custom_call.1} parent=1 // pred_fallthru
      _
    // Predicated region
    $region18: #{tpu_custom_call.1} parent=1 // pred_check
      _
    $region19: #{tpu_custom_call.1} parent=1 // pred_check_branch
      %46 = sbr.rel (0) target = $region21
    $region20: #{tpu_custom_call.1} parent=1 // pred_region
      %47 = dma.done [#allocation3], 256
    $region21: #{tpu_custom_call.1} parent=1 // pred_fallthru
      _
    %48 = vsyncpa [#allocation3], 1

</llo_original>
